<compile_context>
chip_gen: v7x
topology: tpu7x:2x2x1
jax: 0.10.0
libtpu: 0.0.40
codegen_flags: <defaults>
</compile_context>

<pallas_src>
import jax
import jax.numpy as jnp
from jax.experimental import pallas as pl
from jax.experimental.pallas import tpu as pltpu


def _pick_c_tile(C, cap=32):
    """Largest channel tile <= cap that divides C and is a multiple of 8
    (falls back to C, which always satisfies the BlockSpec constraint)."""
    if C <= cap:
        return C
    for t in range(cap, 7, -1):
        if C % t == 0 and t % 8 == 0:
            return t
    return C


def spatial_attention(x, conv_w, conv_b):
    """x: (N, C, H, W); conv_w: (1, 2, 3, 3); conv_b: (1,). Returns (N,1,H,W)."""
    N, C, H, W = x.shape
    S = H * W
    c_tile = _pick_c_tile(C)
    n_c = C // c_tile

    # Layout plumbing in the wrapper (free on contiguous HBM): lane-dense S.
    x_flat = x.reshape(N, C, S)
    # Column index of each flattened pixel (avoids vector int div/mod inside
    # the kernel); row masks come from an in-kernel lane iota.
    col_ids = (jnp.arange(S, dtype=jnp.int32) % W).reshape(1, S)
    w_flat = conv_w.reshape(-1).astype(jnp.float32)   # (18,) OIHW order
    b_flat = conv_b.reshape(-1).astype(jnp.float32)   # (1,)

    inv_c = 1.0 / C

    def kernel(x_ref, col_ref, w_ref, b_ref, o_ref, mx_acc, sm_acc):
        c_idx = pl.program_id(1)

        # One load of the (c_tile, S) slab feeds both reductions.
        xb = x_ref[0].astype(jnp.float32)                 # (c_tile, S)
        part_max = jnp.max(xb, axis=0, keepdims=True)     # (1, S)
        part_sum = jnp.sum(xb, axis=0, keepdims=True)     # (1, S)

        @pl.when(c_idx == 0)
        def _init():
            mx_acc[...] = part_max
            sm_acc[...] = part_sum

        @pl.when(c_idx != 0)
        def _accum():
            mx_acc[...] = jnp.maximum(mx_acc[...], part_max)
            sm_acc[...] = sm_acc[...] + part_sum

        @pl.when(c_idx == pl.num_programs(1) - 1)
        def _finalize():
            mx = mx_acc[...]                              # (1, S)
            av = sm_acc[...] * inv_c                      # (1, S)

            col = col_ref[...]                            # (1, S) int32
            pidx = jax.lax.broadcasted_iota(jnp.int32, (1, S), 1)
            ok_up = pidx >= W                             # row >= 1
            ok_down = pidx < (H - 1) * W                  # row <= H-2
            ok_left = col >= 1
            ok_right = col <= W - 2

            acc = jnp.full((1, S), b_ref[0], dtype=jnp.float32)
            # 3x3 conv (2 -> 1 channels) as roll+mask taps in flattened layout.
            for di in (-1, 0, 1):
                for dj in (-1, 0, 1):
                    w_mx = w_ref[(di + 1) * 3 + (dj + 1)]       # in-chan 0: max
                    w_av = w_ref[9 + (di + 1) * 3 + (dj + 1)]   # in-chan 1: avg
                    k = di * W + dj
                    if k == 0:
                        tap = w_mx * mx + w_av * av
                    else:
                        sh = (-k) % S
                        tap = (w_mx * pltpu.roll(mx, shift=sh, axis=1)
                               + w_av * pltpu.roll(av, shift=sh, axis=1))
                    mask = None
                    if di == -1:
                        mask = ok_up
                    elif di == 1:
                        mask = ok_down
                    if dj == -1:
                        mask = ok_left if mask is None else jnp.logical_and(mask, ok_left)
                    elif dj == 1:
                        mask = ok_right if mask is None else jnp.logical_and(mask, ok_right)
                    if mask is not None:
                        tap = jnp.where(mask, tap, 0.0)
                    acc = acc + tap

            o_ref[0] = jax.nn.sigmoid(acc).astype(o_ref.dtype)

    out_flat = pl.pallas_call(
        kernel,
        out_shape=jax.ShapeDtypeStruct((N, 1, S), x.dtype),
        grid_spec=pltpu.PrefetchScalarGridSpec(
            num_scalar_prefetch=0,
            grid=(N, n_c),
            in_specs=[
                pl.BlockSpec((1, c_tile, S), lambda n, c: (n, c, 0)),
                pl.BlockSpec((1, S), lambda n, c: (0, 0)),
                pl.BlockSpec(memory_space=pltpu.MemorySpace.SMEM),
                pl.BlockSpec(memory_space=pltpu.MemorySpace.SMEM),
            ],
            out_specs=pl.BlockSpec((1, 1, S), lambda n, c: (n, 0, 0)),
            scratch_shapes=[pltpu.VMEM((1, S), jnp.float32),
                            pltpu.VMEM((1, S), jnp.float32)],
        ),
        compiler_params=pltpu.CompilerParams(
            dimension_semantics=("parallel", "arbitrary")),
    )(x_flat, col_ids, w_flat, b_flat)

    return out_flat.reshape(N, 1, H, W)


def reference(x, conv_w, conv_b):
    """Pure-JAX reference for sanity checking."""
    mx = jnp.max(x, axis=1, keepdims=True)
    av = jnp.mean(x, axis=1, keepdims=True)
    feat = jnp.concatenate([mx, av], axis=1)           # (N, 2, H, W)
    out = jax.lax.conv_general_dilated(
        feat, conv_w, window_strides=(1, 1), padding=((1, 1), (1, 1)),
        dimension_numbers=("NCHW", "OIHW", "NCHW"))
    return jax.nn.sigmoid(out + conv_b.reshape(1, -1, 1, 1))


if __name__ == "__main__":
    key = jax.random.PRNGKey(0)
    kx, kw, kb = jax.random.split(key, 3)

    # Small shapes consistent with the module's forward.
    N, C, H, W = 2, 4, 16, 16
    x = jax.random.normal(kx, (N, C, H, W), dtype=jnp.float32)

    # Deterministic parameter init (Conv2d(2, 1, 3, padding=1) shapes).
    fan_in = 2 * 3 * 3
    bound = 1.0 / (fan_in ** 0.5)
    conv_w = jax.random.uniform(kw, (1, 2, 3, 3), jnp.float32, -bound, bound)
    conv_b = jax.random.uniform(kb, (1,), jnp.float32, -bound, bound)

    out = spatial_attention(x, conv_w, conv_b)
    out = jax.block_until_ready(out)

    ref = reference(x, conv_w, conv_b)
    assert out.shape == (N, 1, H, W), out.shape
    assert jnp.allclose(out, ref, atol=1e-5, rtol=1e-5), float(
        jnp.max(jnp.abs(out - ref)))

    print("KERNEL_OK")
</pallas_src>

<mosaic_0001>
module attributes {stable_mosaic.version = 11 : i64} {
  func.func @kernel(%arg0: i32, %arg1: i32, %arg2: memref<1x4x256xf32, #tpu.memory_space<vmem>>, %arg3: memref<1x256xi32, #tpu.memory_space<vmem>>, %arg4: memref<18xf32, #tpu.memory_space<smem>>, %arg5: memref<1xf32, #tpu.memory_space<smem>>, %arg6: memref<1x1x256xf32, #tpu.memory_space<vmem>>, %arg7: memref<1x256xf32, #tpu.memory_space<vmem>>, %arg8: memref<1x256xf32, #tpu.memory_space<vmem>>) attributes {dimension_semantics = [#tpu.dimension_semantics<parallel>, #tpu.dimension_semantics<arbitrary>], iteration_bounds = array<i64: 2, 1>, scalar_prefetch = 0 : i64, scratch_operands = 2 : i64, tpu.core_type = #tpu.core_type<tc>, window_params = [{transform_indices = @transform_0, window_bounds = array<i64: 1, 4, 256>}, {pipeline_mode = #tpu.pipeline_mode<synchronous>, transform_indices = @transform_1, window_bounds = array<i64: 1, 256>}, {transform_indices = @transform_2, window_bounds = array<i64: 18>}, {transform_indices = @transform_3, window_bounds = array<i64: 1>}, {transform_indices = @transform_4, window_bounds = array<i64: 1, 1, 256>}]} {
    %c0 = arith.constant 0 : index
    %c0_0 = arith.constant 0 : index
    %c0_1 = arith.constant 0 : index
    %0 = vector.load %arg2[%c0, %c0_0, %c0_1] : memref<1x4x256xf32, #tpu.memory_space<vmem>>, vector<1x4x256xf32>
    %1 = vector.shape_cast %0 : vector<1x4x256xf32> to vector<4x256xf32>
    %cst = arith.constant dense<0xFF800000> : vector<256xf32>
    %2 = vector.multi_reduction <maximumf>, %1, %cst [0] : vector<4x256xf32> to vector<256xf32>
    %3 = vector.shape_cast %2 : vector<256xf32> to vector<1x256xf32>
    %cst_2 = arith.constant dense<0.000000e+00> : vector<256xf32>
    %4 = vector.multi_reduction <add>, %1, %cst_2 [0] : vector<4x256xf32> to vector<256xf32>
    %5 = vector.shape_cast %4 : vector<256xf32> to vector<1x256xf32>
    %c0_i32 = arith.constant 0 : i32
    %6 = arith.cmpi eq, %arg1, %c0_i32 : i32
    %7 = arith.extui %6 : i1 to i32
    %c0_i32_3 = arith.constant 0 : i32
    %8 = arith.cmpi ne, %7, %c0_i32_3 : i32
    scf.if %8 {
      %c0_8 = arith.constant 0 : index
      %c0_9 = arith.constant 0 : index
      %15 = vector.load %arg7[%c0_8, %c0_9] : memref<1x256xf32, #tpu.memory_space<vmem>>, vector<1x256xf32>
      tpu.vector_store %arg7[%c0_8, %c0_9], %3 {strides = array<i32>} : memref<1x256xf32, #tpu.memory_space<vmem>>, vector<1x256xf32>,
      %c0_10 = arith.constant 0 : index
      %c0_11 = arith.constant 0 : index
      %16 = vector.load %arg8[%c0_10, %c0_11] : memref<1x256xf32, #tpu.memory_space<vmem>>, vector<1x256xf32>
      tpu.vector_store %arg8[%c0_10, %c0_11], %5 {strides = array<i32>} : memref<1x256xf32, #tpu.memory_space<vmem>>, vector<1x256xf32>,
    } else {
    }
    %c0_i32_4 = arith.constant 0 : i32
    %9 = arith.cmpi ne, %arg1, %c0_i32_4 : i32
    %10 = arith.extui %9 : i1 to i32
    %c0_i32_5 = arith.constant 0 : i32
    %11 = arith.cmpi ne, %10, %c0_i32_5 : i32
    scf.if %11 {
      %c0_8 = arith.constant 0 : index
      %c0_9 = arith.constant 0 : index
      %15 = vector.load %arg7[%c0_8, %c0_9] : memref<1x256xf32, #tpu.memory_space<vmem>>, vector<1x256xf32>
      %16 = arith.maximumf %15, %3 : vector<1x256xf32>
      %c0_10 = arith.constant 0 : index
      %c0_11 = arith.constant 0 : index
      %17 = vector.load %arg7[%c0_10, %c0_11] : memref<1x256xf32, #tpu.memory_space<vmem>>, vector<1x256xf32>
      tpu.vector_store %arg7[%c0_10, %c0_11], %16 {strides = array<i32>} : memref<1x256xf32, #tpu.memory_space<vmem>>, vector<1x256xf32>,
      %c0_12 = arith.constant 0 : index
      %c0_13 = arith.constant 0 : index
      %18 = vector.load %arg8[%c0_12, %c0_13] : memref<1x256xf32, #tpu.memory_space<vmem>>, vector<1x256xf32>
      %19 = arith.addf %18, %5 : vector<1x256xf32>
      %c0_14 = arith.constant 0 : index
      %c0_15 = arith.constant 0 : index
      %20 = vector.load %arg8[%c0_14, %c0_15] : memref<1x256xf32, #tpu.memory_space<vmem>>, vector<1x256xf32>
      tpu.vector_store %arg8[%c0_14, %c0_15], %19 {strides = array<i32>} : memref<1x256xf32, #tpu.memory_space<vmem>>, vector<1x256xf32>,
    } else {
    }
    %c0_i32_6 = arith.constant 0 : i32
    %12 = arith.cmpi eq, %arg1, %c0_i32_6 : i32
    %13 = arith.extui %12 : i1 to i32
    %c0_i32_7 = arith.constant 0 : i32
    %14 = arith.cmpi ne, %13, %c0_i32_7 : i32
    scf.if %14 {
      %c0_8 = arith.constant 0 : index
      %c0_9 = arith.constant 0 : index
      %15 = vector.load %arg7[%c0_8, %c0_9] : memref<1x256xf32, #tpu.memory_space<vmem>>, vector<1x256xf32>
      %c0_10 = arith.constant 0 : index
      %c0_11 = arith.constant 0 : index
      %16 = vector.load %arg8[%c0_10, %c0_11] : memref<1x256xf32, #tpu.memory_space<vmem>>, vector<1x256xf32>
      %cst_12 = arith.constant 2.500000e-01 : f32
      %17 = vector.broadcast %cst_12 : f32 to vector<1x256xf32>
      %18 = arith.mulf %16, %17 : vector<1x256xf32>
      %c0_13 = arith.constant 0 : index
      %c0_14 = arith.constant 0 : index
      %19 = vector.load %arg3[%c0_13, %c0_14] : memref<1x256xi32, #tpu.memory_space<vmem>>, vector<1x256xi32>
      %20 = tpu.iota {dimensions = array<i32: 1>} : vector<1x256xi32>
      %c16_i32 = arith.constant 16 : i32
      %21 = vector.broadcast %c16_i32 : i32 to vector<1x256xi32>
      %22 = arith.cmpi sge, %20, %21 : vector<1x256xi32>
      %c240_i32 = arith.constant 240 : i32
      %23 = vector.broadcast %c240_i32 : i32 to vector<1x256xi32>
      %24 = arith.cmpi slt, %20, %23 : vector<1x256xi32>
      %c1_i32 = arith.constant 1 : i32
      %25 = vector.broadcast %c1_i32 : i32 to vector<1x256xi32>
      %26 = arith.cmpi sge, %19, %25 : vector<1x256xi32>
      %c14_i32 = arith.constant 14 : i32
      %27 = vector.broadcast %c14_i32 : i32 to vector<1x256xi32>
      %28 = arith.cmpi sle, %19, %27 : vector<1x256xi32>
      %c0_15 = arith.constant 0 : index
      %29 = memref.load %arg5[%c0_15] : memref<1xf32, #tpu.memory_space<smem>>
      %30 = vector.broadcast %29 : f32 to vector<1x256xf32>
      %c0_16 = arith.constant 0 : index
      %31 = memref.load %arg4[%c0_16] : memref<18xf32, #tpu.memory_space<smem>>
      %c9 = arith.constant 9 : index
      %32 = memref.load %arg4[%c9] : memref<18xf32, #tpu.memory_space<smem>>
      %c17_i32 = arith.constant 17 : i32
      %33 = tpu.dynamic_rotate %15 by %c17_i32 dim 1 : vector<1x256xf32>, i32 -> vector<1x256xf32>
      %34 = vector.broadcast %31 : f32 to vector<1x256xf32>
      %35 = arith.mulf %34, %33 : vector<1x256xf32>
      %c17_i32_17 = arith.constant 17 : i32
      %36 = tpu.dynamic_rotate %18 by %c17_i32_17 dim 1 : vector<1x256xf32>, i32 -> vector<1x256xf32>
      %37 = vector.broadcast %32 : f32 to vector<1x256xf32>
      %38 = arith.mulf %37, %36 : vector<1x256xf32>
      %39 = arith.addf %35, %38 : vector<1x256xf32>
      %40 = arith.andi %22, %26 : vector<1x256xi1>
      %cst_18 = arith.constant 0.000000e+00 : f32
      %41 = vector.broadcast %cst_18 : f32 to vector<1x256xf32>
      %42 = arith.select %40, %39, %41 : vector<1x256xi1>, vector<1x256xf32>
      %43 = arith.addf %30, %42 : vector<1x256xf32>
      %c1 = arith.constant 1 : index
      %44 = memref.load %arg4[%c1] : memref<18xf32, #tpu.memory_space<smem>>
      %c10 = arith.constant 10 : index
      %45 = memref.load %arg4[%c10] : memref<18xf32, #tpu.memory_space<smem>>
      %c16_i32_19 = arith.constant 16 : i32
      %46 = tpu.dynamic_rotate %15 by %c16_i32_19 dim 1 : vector<1x256xf32>, i32 -> vector<1x256xf32>
      %47 = vector.broadcast %44 : f32 to vector<1x256xf32>
      %48 = arith.mulf %47, %46 : vector<1x256xf32>
      %c16_i32_20 = arith.constant 16 : i32
      %49 = tpu.dynamic_rotate %18 by %c16_i32_20 dim 1 : vector<1x256xf32>, i32 -> vector<1x256xf32>
      %50 = vector.broadcast %45 : f32 to vector<1x256xf32>
      %51 = arith.mulf %50, %49 : vector<1x256xf32>
      %52 = arith.addf %48, %51 : vector<1x256xf32>
      %cst_21 = arith.constant 0.000000e+00 : f32
      %53 = vector.broadcast %cst_21 : f32 to vector<1x256xf32>
      %54 = arith.select %22, %52, %53 : vector<1x256xi1>, vector<1x256xf32>
      %55 = arith.addf %43, %54 : vector<1x256xf32>
      %c2 = arith.constant 2 : index
      %56 = memref.load %arg4[%c2] : memref<18xf32, #tpu.memory_space<smem>>
      %c11 = arith.constant 11 : index
      %57 = memref.load %arg4[%c11] : memref<18xf32, #tpu.memory_space<smem>>
      %c15_i32 = arith.constant 15 : i32
      %58 = tpu.dynamic_rotate %15 by %c15_i32 dim 1 : vector<1x256xf32>, i32 -> vector<1x256xf32>
      %59 = vector.broadcast %56 : f32 to vector<1x256xf32>
      %60 = arith.mulf %59, %58 : vector<1x256xf32>
      %c15_i32_22 = arith.constant 15 : i32
      %61 = tpu.dynamic_rotate %18 by %c15_i32_22 dim 1 : vector<1x256xf32>, i32 -> vector<1x256xf32>
      %62 = vector.broadcast %57 : f32 to vector<1x256xf32>
      %63 = arith.mulf %62, %61 : vector<1x256xf32>
      %64 = arith.addf %60, %63 : vector<1x256xf32>
      %65 = arith.andi %22, %28 : vector<1x256xi1>
      %cst_23 = arith.constant 0.000000e+00 : f32
      %66 = vector.broadcast %cst_23 : f32 to vector<1x256xf32>
      %67 = arith.select %65, %64, %66 : vector<1x256xi1>, vector<1x256xf32>
      %68 = arith.addf %55, %67 : vector<1x256xf32>
      %c3 = arith.constant 3 : index
      %69 = memref.load %arg4[%c3] : memref<18xf32, #tpu.memory_space<smem>>
      %c12 = arith.constant 12 : index
      %70 = memref.load %arg4[%c12] : memref<18xf32, #tpu.memory_space<smem>>
      %c1_i32_24 = arith.constant 1 : i32
      %71 = tpu.dynamic_rotate %15 by %c1_i32_24 dim 1 : vector<1x256xf32>, i32 -> vector<1x256xf32>
      %72 = vector.broadcast %69 : f32 to vector<1x256xf32>
      %73 = arith.mulf %72, %71 : vector<1x256xf32>
      %c1_i32_25 = arith.constant 1 : i32
      %74 = tpu.dynamic_rotate %18 by %c1_i32_25 dim 1 : vector<1x256xf32>, i32 -> vector<1x256xf32>
      %75 = vector.broadcast %70 : f32 to vector<1x256xf32>
      %76 = arith.mulf %75, %74 : vector<1x256xf32>
      %77 = arith.addf %73, %76 : vector<1x256xf32>
      %cst_26 = arith.constant 0.000000e+00 : f32
      %78 = vector.broadcast %cst_26 : f32 to vector<1x256xf32>
      %79 = arith.select %26, %77, %78 : vector<1x256xi1>, vector<1x256xf32>
      %80 = arith.addf %68, %79 : vector<1x256xf32>
      %c4 = arith.constant 4 : index
      %81 = memref.load %arg4[%c4] : memref<18xf32, #tpu.memory_space<smem>>
      %c13 = arith.constant 13 : index
      %82 = memref.load %arg4[%c13] : memref<18xf32, #tpu.memory_space<smem>>
      %83 = vector.broadcast %81 : f32 to vector<1x256xf32>
      %84 = arith.mulf %83, %15 : vector<1x256xf32>
      %85 = vector.broadcast %82 : f32 to vector<1x256xf32>
      %86 = arith.mulf %85, %18 : vector<1x256xf32>
      %87 = arith.addf %84, %86 : vector<1x256xf32>
      %88 = arith.addf %80, %87 : vector<1x256xf32>
      %c5 = arith.constant 5 : index
      %89 = memref.load %arg4[%c5] : memref<18xf32, #tpu.memory_space<smem>>
      %c14 = arith.constant 14 : index
      %90 = memref.load %arg4[%c14] : memref<18xf32, #tpu.memory_space<smem>>
      %c255_i32 = arith.constant 255 : i32
      %91 = tpu.dynamic_rotate %15 by %c255_i32 dim 1 : vector<1x256xf32>, i32 -> vector<1x256xf32>
      %92 = vector.broadcast %89 : f32 to vector<1x256xf32>
      %93 = arith.mulf %92, %91 : vector<1x256xf32>
      %c255_i32_27 = arith.constant 255 : i32
      %94 = tpu.dynamic_rotate %18 by %c255_i32_27 dim 1 : vector<1x256xf32>, i32 -> vector<1x256xf32>
      %95 = vector.broadcast %90 : f32 to vector<1x256xf32>
      %96 = arith.mulf %95, %94 : vector<1x256xf32>
      %97 = arith.addf %93, %96 : vector<1x256xf32>
      %cst_28 = arith.constant 0.000000e+00 : f32
      %98 = vector.broadcast %cst_28 : f32 to vector<1x256xf32>
      %99 = arith.select %28, %97, %98 : vector<1x256xi1>, vector<1x256xf32>
      %100 = arith.addf %88, %99 : vector<1x256xf32>
      %c6 = arith.constant 6 : index
      %101 = memref.load %arg4[%c6] : memref<18xf32, #tpu.memory_space<smem>>
      %c15 = arith.constant 15 : index
      %102 = memref.load %arg4[%c15] : memref<18xf32, #tpu.memory_space<smem>>
      %c241_i32 = arith.constant 241 : i32
      %103 = tpu.dynamic_rotate %15 by %c241_i32 dim 1 : vector<1x256xf32>, i32 -> vector<1x256xf32>
      %104 = vector.broadcast %101 : f32 to vector<1x256xf32>
      %105 = arith.mulf %104, %103 : vector<1x256xf32>
      %c241_i32_29 = arith.constant 241 : i32
      %106 = tpu.dynamic_rotate %18 by %c241_i32_29 dim 1 : vector<1x256xf32>, i32 -> vector<1x256xf32>
      %107 = vector.broadcast %102 : f32 to vector<1x256xf32>
      %108 = arith.mulf %107, %106 : vector<1x256xf32>
      %109 = arith.addf %105, %108 : vector<1x256xf32>
      %110 = arith.andi %24, %26 : vector<1x256xi1>
      %cst_30 = arith.constant 0.000000e+00 : f32
      %111 = vector.broadcast %cst_30 : f32 to vector<1x256xf32>
      %112 = arith.select %110, %109, %111 : vector<1x256xi1>, vector<1x256xf32>
      %113 = arith.addf %100, %112 : vector<1x256xf32>
      %c7 = arith.constant 7 : index
      %114 = memref.load %arg4[%c7] : memref<18xf32, #tpu.memory_space<smem>>
      %c16 = arith.constant 16 : index
      %115 = memref.load %arg4[%c16] : memref<18xf32, #tpu.memory_space<smem>>
      %c240_i32_31 = arith.constant 240 : i32
      %116 = tpu.dynamic_rotate %15 by %c240_i32_31 dim 1 : vector<1x256xf32>, i32 -> vector<1x256xf32>
      %117 = vector.broadcast %114 : f32 to vector<1x256xf32>
      %118 = arith.mulf %117, %116 : vector<1x256xf32>
      %c240_i32_32 = arith.constant 240 : i32
      %119 = tpu.dynamic_rotate %18 by %c240_i32_32 dim 1 : vector<1x256xf32>, i32 -> vector<1x256xf32>
      %120 = vector.broadcast %115 : f32 to vector<1x256xf32>
      %121 = arith.mulf %120, %119 : vector<1x256xf32>
      %122 = arith.addf %118, %121 : vector<1x256xf32>
      %cst_33 = arith.constant 0.000000e+00 : f32
      %123 = vector.broadcast %cst_33 : f32 to vector<1x256xf32>
      %124 = arith.select %24, %122, %123 : vector<1x256xi1>, vector<1x256xf32>
      %125 = arith.addf %113, %124 : vector<1x256xf32>
      %c8 = arith.constant 8 : index
      %126 = memref.load %arg4[%c8] : memref<18xf32, #tpu.memory_space<smem>>
      %c17 = arith.constant 17 : index
      %127 = memref.load %arg4[%c17] : memref<18xf32, #tpu.memory_space<smem>>
      %c239_i32 = arith.constant 239 : i32
      %128 = tpu.dynamic_rotate %15 by %c239_i32 dim 1 : vector<1x256xf32>, i32 -> vector<1x256xf32>
      %129 = vector.broadcast %126 : f32 to vector<1x256xf32>
      %130 = arith.mulf %129, %128 : vector<1x256xf32>
      %c239_i32_34 = arith.constant 239 : i32
      %131 = tpu.dynamic_rotate %18 by %c239_i32_34 dim 1 : vector<1x256xf32>, i32 -> vector<1x256xf32>
      %132 = vector.broadcast %127 : f32 to vector<1x256xf32>
      %133 = arith.mulf %132, %131 : vector<1x256xf32>
      %134 = arith.addf %130, %133 : vector<1x256xf32>
      %135 = arith.andi %24, %28 : vector<1x256xi1>
      %cst_35 = arith.constant 0.000000e+00 : f32
      %136 = vector.broadcast %cst_35 : f32 to vector<1x256xf32>
      %137 = arith.select %135, %134, %136 : vector<1x256xi1>, vector<1x256xf32>
      %138 = arith.addf %125, %137 : vector<1x256xf32>
      %139 = arith.negf %138 : vector<1x256xf32>
      %140 = math.exp %139 : vector<1x256xf32>
      %cst_36 = arith.constant 1.000000e+00 : f32
      %141 = vector.broadcast %cst_36 : f32 to vector<1x256xf32>
      %142 = arith.addf %141, %140 : vector<1x256xf32>
      %143 = arith.divf %141, %142 : vector<1x256xf32>
      %c0_37 = arith.constant 0 : index
      %c0_38 = arith.constant 0 : index
      %c0_39 = arith.constant 0 : index
      %144 = vector.load %arg6[%c0_37, %c0_38, %c0_39] : memref<1x1x256xf32, #tpu.memory_space<vmem>>, vector<1x1x256xf32>
      %145 = vector.shape_cast %144 : vector<1x1x256xf32> to vector<1x256xf32>
      %146 = vector.shape_cast %143 : vector<1x256xf32> to vector<1x1x256xf32>
      tpu.vector_store %arg6[%c0_37, %c0_38, %c0_39], %146 {strides = array<i32>} : memref<1x1x256xf32, #tpu.memory_space<vmem>>, vector<1x1x256xf32>,
    } else {
    }
    return
  }
  func.func @transform_0(%arg0: i32, %arg1: i32) -> (i32, i32, i32) {
    %c0_i32 = arith.constant 0 : i32
    %c0_i32_0 = arith.constant 0 : i32
    return %arg0, %arg1, %c0_i32 : i32, i32, i32
  }
  func.func @transform_1(%arg0: i32, %arg1: i32) -> (i32, i32) {
    %c0_i32 = arith.constant 0 : i32
    %c0_i32_0 = arith.constant 0 : i32
    %c0_i32_1 = arith.constant 0 : i32
    return %c0_i32, %c0_i32_0 : i32, i32
  }
  func.func @transform_2(%arg0: i32, %arg1: i32) -> i32 {
    %c0_i32 = arith.constant 0 : i32
    %c0_i32_0 = arith.constant 0 : i32
    return %c0_i32 : i32
  }
  func.func @transform_3(%arg0: i32, %arg1: i32) -> i32 {
    %c0_i32 = arith.constant 0 : i32
    %c0_i32_0 = arith.constant 0 : i32
    return %c0_i32 : i32
  }
  func.func @transform_4(%arg0: i32, %arg1: i32) -> (i32, i32, i32) {
    %c0_i32 = arith.constant 0 : i32
    %c0_i32_0 = arith.constant 0 : i32
    %c0_i32_1 = arith.constant 0 : i32
    return %arg0, %c0_i32, %c0_i32_0 : i32, i32, i32
  }
}

</mosaic_0001>

<llo_original>
// kernel: tpu_custom_call.1
$region0: #{tpu_custom_call.1}
  #allocation0 [shape = 'u32[]', space=smem, size = 0x4, offset = 0x4, fixed_abs, tag = 'smem constant byte address 0x4 - core index']
  #allocation1 [shape = 'u32[144,128]{1,0:T(1,128)}', space=vmem, size = 0x12000, scoped, tag = 'internal scratch']
  #allocation2 [shape = 'f32[1,256]{1,0:T(1,128)}', space=vmem, size = 0x400, scoped, tag = 'scratch operand']
  #allocation3 [shape = 'f32[1,256]{1,0:T(1,128)}', space=vmem, size = 0x400, scoped, tag = 'scratch operand']
  #allocation4 [shape = 'f32[1]{0:T(128)S(6)}', space=smem, size = 0x200, scoped, tag = 'scoped memory for tpu_custom_call.1']
  %s0 = inlined_call_operand.hbm [shape: f32[2,4,256], index: 0, kind: input, shape index: {}]
  %s1 = inlined_call_operand.vmem [shape: s32[1,256], index: 1, kind: input, shape index: {}]
  %s2 = inlined_call_operand.vmem [shape: f32[18], index: 2, kind: input, shape index: {}]
  %s3 = inlined_call_operand.<no memory space> [shape: f32[1], index: 3, kind: input, shape index: {}]
  %s4 = inlined_call_operand.hbm [shape: f32[2,1,256], index: 4, kind: output, shape index: {}]
  %s5 = sld [smem:[#allocation0]]
  $region69: #{tpu_custom_call.1} parent=0
    _
  %s7 = ssub.s32 1, %s5
  %s8 = scalar_select 0, %s7, %s5
  %9 = sst [smem:[#allocation4]] %s3
  $region1: #{tpu_custom_call.1} parent=0
    #allocation5 [shape = 'u8[8192]{0}', space=vmem, size = 0x2000, scoped, tag = 'input window, operand 0']
    #allocation6 [shape = 's32[2]{0}', space=sflag, size = 0x8, scoped, tag = 'scoped memory for tpu_custom_call.1']
    #allocation7 [shape = 's32[2]{0}', space=sflag, size = 0x8, scoped, tag = 'scoped memory for tpu_custom_call.1']
    #allocation8 [shape = 's32[2]{0}', space=sflag, size = 0x8, scoped, tag = 'scoped memory for tpu_custom_call.1']
    #allocation9 [shape = 'u8[512]{0}', space=smem, size = 0x200, scoped, tag = 'input window, operand 2, single buffered']
    #allocation10 [shape = 'u8[2048]{0}', space=vmem, size = 0x800, scoped, tag = 'output window, operand 0']
    %10 = vsyncpa [#allocation6], 0
    %s11 = scalar_lea.sflag [#allocation6], 1
    %12 = vsyncpa %s11, 0
    %13 = vsyncpa [#allocation8], 0
    %14 = vsyncpa [#allocation7], 0
    %s15 = scalar_lea.sflag [#allocation7], 1
    %16 = vsyncpa %s15, 0
    loop: start=0, step=1, limit=4
    $region2: #{tpu_custom_call.1} parent=1 // loop_pre_header
      _
    $region3: #{tpu_custom_call.1} parent=1 // loop_header
      %s18 = sphi 0, %s22
      %p19 = scmp.ge.s32.totalorder %s18, 4
      %s25 = sphi 0, %s37
      %s26 = sphi 0, %s33
      %s27 = sphi 0, %s25
      %s28 = sphi 0, %s26
      %s29 = sphi 0, %s27
      %s30 = sphi 0, %s28
      %s42 = sphi 0, %s44
      %s45 = sphi 0, %s42
      %s46 = sphi 0, %s45
      %s62 = sphi 0, %s46
      %s66 = sphi 0, %s66
      %s68 = sphi 0, %s66
      %s69 = sphi 0, %s68
      %s83 = sphi 0, %s69
      %s87 = sphi 0, %s87
      %s89 = sphi 0, %s87
      %s90 = sphi 0, %s89
      %s104 = sphi 0, %s90
      %s108 = sphi 0, %s108
      %s110 = sphi 0, %s108
      %s111 = sphi 0, %s110
      %s125 = sphi 0, %s111
      %s131 = sphi 0, %s133
      %s134 = sphi 0, %s131
      %s135 = sphi 0, %s134
      %s151 = sphi 0, %s135
    $region4: #{tpu_custom_call.1} parent=1 // loop_header_branch
      %21 = sbr.rel (%p19) target = $region8
    $region5: #{tpu_custom_call.1} parent=1 // loop_body
      %s23 = ssub.s32 %s18, 1
      %s24 = ssub.s32 %s18, 2
      %s31 = sadd.s32 1, %s26
      %p32 = scmp.ge.s32.totalorder %s31, 1
      %s33 = scalar_select %p32, 0, %s31
      %s34 = sadd.s32 1, %s25
      %s35 = scalar_select %p32, %s34, %s25
      %p36 = scmp.ge.s32.totalorder %s35, 2
      %s37 = scalar_select %p36, 0, %s35
      %s38 = ssub.s32 %s25, %s37
      %s39 = ssub.s32 %s26, %s33
      %s40 = sor.u32 %s38, %s39
      %p41 = scmp.eq.s32.totalorder %s40, 0
      %s43 = sadd.s32 %s42, 1
      %s44 = scalar_select %p41, %s42, %s43
      %p47 = pneg %p41
      %p48 = scmp.eq.s32.totalorder %s18, 1
      %p49 = por %p47, %p48
      %p50 = scmp.ne.s32.totalorder %s42, %s45
      %p51 = scmp.eq.s32.totalorder %s18, 0
      %p52 = por %p50, %p51
      %p53 = scmp.ne.s32.totalorder %s42, %s45
      %p54 = scmp.eq.s32.totalorder %s23, 1
      %p55 = por %p53, %p54
      %p56 = scmp.ne.s32.totalorder %s45, %s46
      %p57 = scmp.eq.s32.totalorder %s23, 0
      %p58 = por %p56, %p57
      %p59 = scmp.ne.s32.totalorder %s45, %s46
      %p60 = scmp.eq.s32.totalorder %s24, 1
      %p61 = por %p59, %p60
      %p63 = scmp.ne.s32.totalorder %s46, %s62
      %p64 = scmp.eq.s32.totalorder %s24, 0
      %p65 = por %p63, %p64
      %s67 = sadd.s32 %s66, 1
      %p70 = scmp.eq.s32.totalorder %s18, 1
      %p71 = scmp.ne.s32.totalorder %s66, %s68
      %p72 = scmp.eq.s32.totalorder %s18, 0
      %p73 = por %p71, %p72
      %p74 = scmp.ne.s32.totalorder %s66, %s68
      %p75 = scmp.eq.s32.totalorder %s23, 1
      %p76 = por %p74, %p75
      %p77 = scmp.ne.s32.totalorder %s68, %s69
      %p78 = scmp.eq.s32.totalorder %s23, 0
      %p79 = por %p77, %p78
      %p80 = scmp.ne.s32.totalorder %s68, %s69
      %p81 = scmp.eq.s32.totalorder %s24, 1
      %p82 = por %p80, %p81
      %p84 = scmp.ne.s32.totalorder %s69, %s83
      %p85 = scmp.eq.s32.totalorder %s24, 0
      %p86 = por %p84, %p85
      %s88 = sadd.s32 %s87, 1
      %p91 = scmp.eq.s32.totalorder %s18, 1
      %p92 = scmp.ne.s32.totalorder %s87, %s89
      %p93 = scmp.eq.s32.totalorder %s18, 0
      %p94 = por %p92, %p93
      %p95 = scmp.ne.s32.totalorder %s87, %s89
      %p96 = scmp.eq.s32.totalorder %s23, 1
      %p97 = por %p95, %p96
      %p98 = scmp.ne.s32.totalorder %s89, %s90
      %p99 = scmp.eq.s32.totalorder %s23, 0
      %p100 = por %p98, %p99
      %p101 = scmp.ne.s32.totalorder %s89, %s90
      %p102 = scmp.eq.s32.totalorder %s24, 1
      %p103 = por %p101, %p102
      %p105 = scmp.ne.s32.totalorder %s90, %s104
      %p106 = scmp.eq.s32.totalorder %s24, 0
      %p107 = por %p105, %p106
      %s109 = sadd.s32 %s108, 1
      %p112 = scmp.eq.s32.totalorder %s18, 1
      %p113 = scmp.ne.s32.totalorder %s108, %s110
      %p114 = scmp.eq.s32.totalorder %s18, 0
      %p115 = por %p113, %p114
      %p116 = scmp.ne.s32.totalorder %s108, %s110
      %p117 = scmp.eq.s32.totalorder %s23, 1
      %p118 = por %p116, %p117
      %p119 = scmp.ne.s32.totalorder %s110, %s111
      %p120 = scmp.eq.s32.totalorder %s23, 0
      %p121 = por %p119, %p120
      %p122 = scmp.ne.s32.totalorder %s110, %s111
      %p123 = scmp.eq.s32.totalorder %s24, 1
      %p124 = por %p122, %p123
      %p126 = scmp.ne.s32.totalorder %s111, %s125
      %p127 = scmp.eq.s32.totalorder %s24, 0
      %p128 = por %p126, %p127
      %s129 = ssub.s32 %s25, %s37
      %p130 = scmp.eq.s32.totalorder %s129, 0
      %s132 = sadd.s32 %s131, 1
      %s133 = scalar_select %p130, %s131, %s132
      %p136 = pneg %p130
      %p137 = scmp.eq.s32.totalorder %s18, 1
      %p138 = por %p136, %p137
      %p139 = scmp.ne.s32.totalorder %s131, %s134
      %p140 = scmp.eq.s32.totalorder %s18, 0
      %p141 = por %p139, %p140
      %p142 = scmp.ne.s32.totalorder %s131, %s134
      %p143 = scmp.eq.s32.totalorder %s23, 1
      %p144 = por %p142, %p143
      %p145 = scmp.ne.s32.totalorder %s134, %s135
      %p146 = scmp.eq.s32.totalorder %s23, 0
      %p147 = por %p145, %p146
      %p148 = scmp.ne.s32.totalorder %s134, %s135
      %p149 = scmp.eq.s32.totalorder %s24, 1
      %p150 = por %p148, %p149
      %p152 = scmp.ne.s32.totalorder %s135, %s151
      %p153 = scmp.eq.s32.totalorder %s24, 0
      %p154 = por %p152, %p153
      %p155 = scmp.le.s32.totalorder 1, %s18
      %p156 = scmp.lt.s32.totalorder %s18, 3
      %p157 = pnand %p155, %p156
      %p158 = pneg %p157
      // Predicated region
      $region9: #{tpu_custom_call.1} parent=5 // pred_check
        _
      $region10: #{tpu_custom_call.1} parent=5 // pred_check_branch
        %160 = sbr.rel (%p157) target = $region12
      $region11: #{tpu_custom_call.1} parent=5 // pred_region
        %s161 = ssub.s32 %s18, 1
        // Predicated region
        $region13: #{tpu_custom_call.1} parent=11 // pred_check
          %p162 = pneg %p79
        $region14: #{tpu_custom_call.1} parent=11 // pred_check_branch
          %164 = sbr.rel (%p162) target = $region16
        $region15: #{tpu_custom_call.1} parent=11 // pred_region
          _
        $region16: #{tpu_custom_call.1} parent=11 // pred_fallthru
          _
        // Predicated region
        $region17: #{tpu_custom_call.1} parent=11 // pred_check
          %p165 = pneg %p100
        $region18: #{tpu_custom_call.1} parent=11 // pred_check_branch
          %167 = sbr.rel (%p165) target = $region20
        $region19: #{tpu_custom_call.1} parent=11 // pred_region
          %s169 = ssub.s32 16, 16
          %170 = vsyncadd [#allocation8], %s169
          %s172 = sshll.u32 %s2, 4
          %s173 = int_to_ptr.vmem [resolvable:$true] %s172
          %175 = dma.vmem_to_smem %s173, 16, [#allocation9], [#allocation8]
        $region20: #{tpu_custom_call.1} parent=11 // pred_fallthru
          _
        // Predicated region
        $region21: #{tpu_custom_call.1} parent=11 // pred_check
          %p176 = pneg %p121
        $region22: #{tpu_custom_call.1} parent=11 // pred_check_branch
          %178 = sbr.rel (%p176) target = $region24
        $region23: #{tpu_custom_call.1} parent=11 // pred_region
          _
        $region24: #{tpu_custom_call.1} parent=11 // pred_fallthru
          _
      $region12: #{tpu_custom_call.1} parent=5 // pred_fallthru
        _
      %p179 = scmp.lt.s32.totalorder %s18, 2
      // Predicated region
      $region25: #{tpu_custom_call.1} parent=5 // pred_check
        %p180 = pneg %p179
      $region26: #{tpu_custom_call.1} parent=5 // pred_check_branch
        %182 = sbr.rel (%p180) target = $region28
      $region27: #{tpu_custom_call.1} parent=5 // pred_region
        // Predicated region
        $region29: #{tpu_custom_call.1} parent=27 // pred_check
          %p183 = pneg %p52
        $region30: #{tpu_custom_call.1} parent=27 // pred_check_branch
          %185 = sbr.rel (%p183) target = $region32
        $region31: #{tpu_custom_call.1} parent=27 // pred_region
          %s186 = sand.u32 %s42, 1
          %s187 = scalar_lea.sflag [#allocation6], %s186
          %s188 = sand.u32 %s42, 1
          %s189 = smul.addr %s188, 8
          %s190 = scalar_lea.vmem [#allocation5], %s189
          %s192 = ssub.s32 128, 128
          %193 = vsyncadd %s187, %s192
          %s194 = smul.addr %s26, 2
          %s195 = smul.addr %s25, 2
          %s196 = sadd.s32 %s194, %s195
          %s197 = smul.addr %s196, 64
          %s198 = scalar_lea.hbm %s0, %s197
          %s200 = sshll.u32 %s190, 4
          %s201 = int_to_ptr.vmem [resolvable:$true] %s200
          %203 = dma.hbm_to_vmem [thread:$0]  %s198, 128, %s201, %s187
        $region32: #{tpu_custom_call.1} parent=27 // pred_fallthru
          _
      $region28: #{tpu_custom_call.1} parent=5 // pred_fallthru
        _
      %p204 = scmp.le.s32.totalorder 1, %s18
      %p205 = scmp.lt.s32.totalorder %s18, 3
      %p206 = pnand %p204, %p205
      %p207 = pneg %p206
      // Predicated region
      $region33: #{tpu_custom_call.1} parent=5 // pred_check
        _
      $region34: #{tpu_custom_call.1} parent=5 // pred_check_branch
        %209 = sbr.rel (%p206) target = $region36
      $region35: #{tpu_custom_call.1} parent=5 // pred_region
        %s210 = ssub.s32 %s18, 1
        %s211 = sand.u32 %s45, 1
        %s212 = scalar_lea.sflag [#allocation6], %s211
        %s213 = sand.u32 %s45, 1
        %s214 = smul.addr %s213, 8
        %s215 = scalar_lea.vmem [#allocation5], %s214
        // Predicated region
        $region37: #{tpu_custom_call.1} parent=35 // pred_check
          %p216 = pneg %p58
        $region38: #{tpu_custom_call.1} parent=35 // pred_check_branch
          %218 = sbr.rel (%p216) target = $region40
        $region39: #{tpu_custom_call.1} parent=35 // pred_region
          %219 = dma.done %s212, 128
        $region40: #{tpu_custom_call.1} parent=35 // pred_fallthru
          _
        // Predicated region
        $region41: #{tpu_custom_call.1} parent=35 // pred_check
          %p220 = pneg %p100
        $region42: #{tpu_custom_call.1} parent=35 // pred_check_branch
          %222 = sbr.rel (%p220) target = $region44
        $region43: #{tpu_custom_call.1} parent=35 // pred_region
          %223 = dma.done [#allocation8], 16
        $region44: #{tpu_custom_call.1} parent=35 // pred_fallthru
          _
        %224 = sfence
        %s225 = sand.u32 %s45, 1
        %s226 = scalar_lea.sflag [#allocation6], %s225
        %s227 = sand.u32 %s45, 1
        %s228 = smul.addr %s227, 8
        %s229 = scalar_lea.vmem [#allocation5], %s228
        %p230 = pneg %p58
        %p231 = pneg %p55
        %p232 = pneg %p79
        %p233 = pneg %p76
        %p234 = pneg %p100
        %p235 = pneg %p97
        %p236 = pneg %p121
        %p237 = pneg %p118
        %p238 = pneg %p147
        %p239 = pneg %p144
        %s240 = sand.u32 %s134, 1
        %s241 = scalar_lea.sflag [#allocation7], %s240
        %s242 = sand.u32 %s134, 1
        %s243 = smul.addr %s242, 2
        %s244 = scalar_lea.vmem [#allocation10], %s243
        %v245 = vld [vmem:[%s215] sm:$0xff]
        %v247 = vcombine.high %v245, %v245
        %vm249 = vcmask 1043456
        %v250 = vsel %vm249, %v245, -inf
        %v251 = vrot.slane %v250, 4
        %v252 = vmax.f32 %v250, %v251
        %v253 = vrot.slane %v252, 2
        %v254 = vmax.f32 %v252, %v253
        %v255 = vrot.slane %v254, 1
        %v256 = vmax.f32 %v254, %v255
        %v257 = vsel %vm249, %v247, -inf
        %v258 = vrot.slane %v257, 4
        %v259 = vmax.f32 %v257, %v258
        %v260 = vrot.slane %v259, 2
        %v261 = vmax.f32 %v259, %v260
        %v262 = vrot.slane %v261, 1
        %v263 = vmax.f32 %v261, %v262
        %v264 = vsel %vm249, %v245, 0.0
        %v265 = vrot.slane %v264, 4
        %v266 = vadd.f32 %v264, %v265
        %v267 = vrot.slane %v266, 2
        %v268 = vadd.f32 %v266, %v267
        %v269 = vrot.slane %v268, 1
        %v270 = vadd.f32 %v268, %v269
        %v271 = vsel %vm249, %v247, 0.0
        %v272 = vrot.slane %v271, 4
        %v273 = vadd.f32 %v271, %v272
        %v274 = vrot.slane %v273, 2
        %v275 = vadd.f32 %v273, %v274
        %v276 = vrot.slane %v275, 1
        %v277 = vadd.f32 %v275, %v276
        %p278 = scmp.eq.s32.totalorder %s28, 0
        // Predicated region
        $region45: #{tpu_custom_call.1} parent=35 // pred_check
          %p279 = pneg %p278
        $region46: #{tpu_custom_call.1} parent=35 // pred_check_branch
          %281 = sbr.rel (%p279) target = $region48
        $region47: #{tpu_custom_call.1} parent=35 // pred_region
          %v284 = vcombine.low %v256, %v263
          %v286 = vunpack.c.l.s4 1966171168
          %v287 = vunpack.c.0.s8 %v286
          %v288 = vlaneseq
          %v289 = vshrl.u32 %v288, 7
          %v290 = vsub.s32 %v287, %v289
          %v291 = vrot.slane %v284, %v290
          %v293 = vunpack.c.l.s4 1966171168
          %v294 = vunpack.c.0.s8 %v293
          %v295 = vlaneseq
          %v296 = vshrl.u32 %v295, 7
          %v297 = vsub.s32 %v294, %v296
          %v298 = vrot.slane %v291, %v297
          %v300 = vlaneseq
          %vm301 = vcmp.ge.s32.totalorder %v300, 0
          %vm302 = vcmp.lt.s32.totalorder %v300, 256
          %vm303 = vmand %vm301, %vm302
          %304 = vst.msk [vmem:[#allocation2] sm:$0x3] %vm303, %v298
          %v307 = vcombine.low %v270, %v277
          %v309 = vunpack.c.l.s4 1966171168
          %v310 = vunpack.c.0.s8 %v309
          %v311 = vlaneseq
          %v312 = vshrl.u32 %v311, 7
          %v313 = vsub.s32 %v310, %v312
          %v314 = vrot.slane %v307, %v313
          %v316 = vunpack.c.l.s4 1966171168
          %v317 = vunpack.c.0.s8 %v316
          %v318 = vlaneseq
          %v319 = vshrl.u32 %v318, 7
          %v320 = vsub.s32 %v317, %v319
          %v321 = vrot.slane %v314, %v320
          %323 = vst.msk [vmem:[#allocation3] sm:$0x3] %vm303, %v321
        $region48: #{tpu_custom_call.1} parent=35 // pred_fallthru
          _
        %p324 = scmp.ne.s32.totalorder %s28, 0
        // Predicated region
        $region49: #{tpu_custom_call.1} parent=35 // pred_check
          %p325 = pneg %p324
        $region50: #{tpu_custom_call.1} parent=35 // pred_check_branch
          %327 = sbr.rel (%p325) target = $region52
        $region51: #{tpu_custom_call.1} parent=35 // pred_region
          %v328 = vld [vmem:[#allocation2] sm:$0x3]
          %v331 = vcombine.low %v256, %v263
          %v333 = vunpack.c.l.s4 1966171168
          %v334 = vunpack.c.0.s8 %v333
          %v335 = vlaneseq
          %v336 = vshrl.u32 %v335, 7
          %v337 = vsub.s32 %v334, %v336
          %v338 = vrot.slane %v331, %v337
          %v340 = vunpack.c.l.s4 1966171168
          %v341 = vunpack.c.0.s8 %v340
          %v342 = vlaneseq
          %v343 = vshrl.u32 %v342, 7
          %v344 = vsub.s32 %v341, %v343
          %v345 = vrot.slane %v338, %v344
          %v347 = vmax.f32 %v328, %v345
          %v348 = vlaneseq
          %vm349 = vcmp.ge.s32.totalorder %v348, 0
          %vm350 = vcmp.lt.s32.totalorder %v348, 256
          %vm351 = vmand %vm349, %vm350
          %352 = vst.msk [vmem:[#allocation2] sm:$0x3] %vm351, %v347
          %v353 = vld [vmem:[#allocation3] sm:$0x3]
          %v356 = vcombine.low %v270, %v277
          %v358 = vunpack.c.l.s4 1966171168
          %v359 = vunpack.c.0.s8 %v358
          %v360 = vlaneseq
          %v361 = vshrl.u32 %v360, 7
          %v362 = vsub.s32 %v359, %v361
          %v363 = vrot.slane %v356, %v362
          %v365 = vunpack.c.l.s4 1966171168
          %v366 = vunpack.c.0.s8 %v365
          %v367 = vlaneseq
          %v368 = vshrl.u32 %v367, 7
          %v369 = vsub.s32 %v366, %v368
          %v370 = vrot.slane %v363, %v369
          %v372 = vadd.f32 %v353, %v370
          %373 = vst.msk [vmem:[#allocation3] sm:$0x3] %vm351, %v372
        $region52: #{tpu_custom_call.1} parent=35 // pred_fallthru
          _
        // Predicated region
        $region53: #{tpu_custom_call.1} parent=35 // pred_check
          %p374 = pneg %p278
        $region54: #{tpu_custom_call.1} parent=35 // pred_check_branch
          %376 = sbr.rel (%p374) target = $region56
        $region55: #{tpu_custom_call.1} parent=35 // pred_region
          %v377 = vld [vmem:[#allocation2] sm:$0x3]
          %v378 = vld [vmem:[#allocation3] sm:$0x3]
          %v379 = vmul.f32 %v378, 0.25
          %v380 = vld [vmem:[%s1] sm:$0x3]
          %v381 = vlaneseq
          %v382 = vand.u32 %v381, 127
          %v383 = vadd.s32 %v382, 128
          %vm384 = vcmp.ge.s32.totalorder %v382, 16
          %vm385 = vcmp.ge.s32.totalorder %v383, 16
          %vm386 = vcmp.lt.s32.totalorder %v382, 240
          %vm387 = vcmp.lt.s32.totalorder %v383, 240
          %vm388 = vcmp.ge.s32.totalorder %v380, 1
          %vm389 = vcmp.le.s32.totalorder %v380, 14
          %s390 = sld [smem:[#allocation4]]
          %v391 = vstv %s390
          %s392 = sld [smem:[#allocation9]]
          %s393 = sld [smem:[#allocation9 + $0x9]]
          %v395 = vlaneseq
          %v396 = vshrl.u32 %v395, 7
          %v397 = vsub.s32 0, %v396
          %v398 = vrot.slane %v377, %v397
          %v399 = vlaneseq
          %v400 = vshrl.u32 %v399, 7
          %v401 = vsub.s32 1, %v400
          %v402 = vrot.slane %v377, %v401
          %405 = vrot.lane.b32.xlu0 %v398, 17
          %v406 = vpop.permute.xlu0 %405
          %407 = vrot.lane.b32.xlu0 %v402, 17
          %v408 = vpop.permute.xlu0 %407
          %vm409 = vcmp.lt.s32.totalorder %v382, 17
          %v410 = vsel %vm409, %v406, %v408
          %v411 = vsel %vm409, %v408, %v406
          %v412 = vstv %s392
          %v413 = vmul.f32 %v412, %v411
          %v414 = vmul.f32 %v412, %v410
          %v416 = vlaneseq
          %v417 = vshrl.u32 %v416, 7
          %v418 = vsub.s32 0, %v417
          %v419 = vrot.slane %v379, %v418
          %v420 = vlaneseq
          %v421 = vshrl.u32 %v420, 7
          %v422 = vsub.s32 1, %v421
          %v423 = vrot.slane %v379, %v422
          %426 = vrot.lane.b32.xlu0 %v419, 17
          %v427 = vpop.permute.xlu0 %426
          %428 = vrot.lane.b32.xlu0 %v423, 17
          %v429 = vpop.permute.xlu0 %428
          %v430 = vsel %vm409, %v427, %v429
          %v431 = vsel %vm409, %v429, %v427
          %v432 = vstv %s393
          %v433 = vmul.f32 %v432, %v431
          %v434 = vmul.f32 %v432, %v430
          %v435 = vadd.f32 %v413, %v433
          %v436 = vadd.f32 %v414, %v434
          %v437 = vsel %vm388, 1, 0
          %v438 = vlaneseq
          %v439 = vshrl.u32 %v438, 7
          %v440 = vsub.s32 0, %v439
          %v441 = vrot.slane %v437, %v440
          %v442 = vlaneseq
          %v443 = vshrl.u32 %v442, 7
          %v444 = vsub.s32 1, %v443
          %v445 = vrot.slane %v437, %v444
          %vm446 = vcmp.ne.s32.totalorder %v441, 0
          %vm447 = vcmp.ne.s32.totalorder %v445, 0
          %vm448 = vmand %vm384, %vm446
          %vm449 = vmand %vm385, %vm447
          %v450 = vsel %vm448, %v435, 0.0
          %v451 = vsel %vm449, %v436, 0.0
          %v452 = vadd.f32 %v391, %v450
          %v453 = vadd.f32 %v391, %v451
          %s454 = sld [smem:[#allocation9 + $0x1]]
          %s455 = sld [smem:[#allocation9 + $0xa]]
          %456 = vrot.lane.b32.xlu0 %v398, 16
          %v457 = vpop.permute.xlu0 %456
          %458 = vrot.lane.b32.xlu0 %v402, 16
          %v459 = vpop.permute.xlu0 %458
          %vm460 = vcmp.lt.s32.totalorder %v382, 16
          %v461 = vsel %vm460, %v457, %v459
          %v462 = vsel %vm460, %v459, %v457
          %v463 = vstv %s454
          %v464 = vmul.f32 %v463, %v462
          %v465 = vmul.f32 %v463, %v461
          %466 = vrot.lane.b32.xlu0 %v419, 16
          %v467 = vpop.permute.xlu0 %466
          %468 = vrot.lane.b32.xlu0 %v423, 16
          %v469 = vpop.permute.xlu0 %468
          %v470 = vsel %vm460, %v467, %v469
          %v471 = vsel %vm460, %v469, %v467
          %v472 = vstv %s455
          %v473 = vmul.f32 %v472, %v471
          %v474 = vmul.f32 %v472, %v470
          %v475 = vadd.f32 %v464, %v473
          %v476 = vadd.f32 %v465, %v474
          %v477 = vsel %vm384, %v475, 0.0
          %v478 = vsel %vm385, %v476, 0.0
          %v479 = vadd.f32 %v452, %v477
          %v480 = vadd.f32 %v453, %v478
          %s481 = sld [smem:[#allocation9 + $0x2]]
          %s482 = sld [smem:[#allocation9 + $0xb]]
          %483 = vrot.lane.b32.xlu0 %v398, 15
          %v484 = vpop.permute.xlu0 %483
          %485 = vrot.lane.b32.xlu0 %v402, 15
          %v486 = vpop.permute.xlu0 %485
          %vm487 = vcmp.lt.s32.totalorder %v382, 15
          %v488 = vsel %vm487, %v484, %v486
          %v489 = vsel %vm487, %v486, %v484
          %v490 = vstv %s481
          %v491 = vmul.f32 %v490, %v489
          %v492 = vmul.f32 %v490, %v488
          %493 = vrot.lane.b32.xlu0 %v419, 15
          %v494 = vpop.permute.xlu0 %493
          %495 = vrot.lane.b32.xlu0 %v423, 15
          %v496 = vpop.permute.xlu0 %495
          %v497 = vsel %vm487, %v494, %v496
          %v498 = vsel %vm487, %v496, %v494
          %v499 = vstv %s482
          %v500 = vmul.f32 %v499, %v498
          %v501 = vmul.f32 %v499, %v497
          %v502 = vadd.f32 %v491, %v500
          %v503 = vadd.f32 %v492, %v501
          %v504 = vsel %vm389, 1, 0
          %v505 = vlaneseq
          %v506 = vshrl.u32 %v505, 7
          %v507 = vsub.s32 0, %v506
          %v508 = vrot.slane %v504, %v507
          %v509 = vlaneseq
          %v510 = vshrl.u32 %v509, 7
          %v511 = vsub.s32 1, %v510
          %v512 = vrot.slane %v504, %v511
          %vm513 = vcmp.ne.s32.totalorder %v508, 0
          %vm514 = vcmp.ne.s32.totalorder %v512, 0
          %vm515 = vmand %vm384, %vm513
          %vm516 = vmand %vm385, %vm514
          %v517 = vsel %vm515, %v502, 0.0
          %v518 = vsel %vm516, %v503, 0.0
          %v519 = vadd.f32 %v479, %v517
          %v520 = vadd.f32 %v480, %v518
          %s521 = sld [smem:[#allocation9 + $0x3]]
          %s522 = sld [smem:[#allocation9 + $0xc]]
          %523 = vrot.lane.b32.xlu0 %v398, 1
          %v524 = vpop.permute.xlu0 %523
          %525 = vrot.lane.b32.xlu0 %v402, 1
          %v526 = vpop.permute.xlu0 %525
          %vm527 = vcmp.lt.s32.totalorder %v382, 1
          %v528 = vsel %vm527, %v524, %v526
          %v529 = vsel %vm527, %v526, %v524
          %v530 = vstv %s521
          %v531 = vmul.f32 %v530, %v529
          %v532 = vmul.f32 %v530, %v528
          %533 = vrot.lane.b32.xlu0 %v419, 1
          %v534 = vpop.permute.xlu0 %533
          %535 = vrot.lane.b32.xlu0 %v423, 1
          %v536 = vpop.permute.xlu0 %535
          %v537 = vsel %vm527, %v534, %v536
          %v538 = vsel %vm527, %v536, %v534
          %v539 = vstv %s522
          %v540 = vmul.f32 %v539, %v538
          %v541 = vmul.f32 %v539, %v537
          %v542 = vadd.f32 %v531, %v540
          %v543 = vadd.f32 %v532, %v541
          %v546 = vcombine.low %v542, %v543
          %v548 = vunpack.c.l.s4 1966171168
          %v549 = vunpack.c.0.s8 %v548
          %v550 = vlaneseq
          %v551 = vshrl.u32 %v550, 7
          %v552 = vsub.s32 %v549, %v551
          %v553 = vrot.slane %v546, %v552
          %v555 = vunpack.c.l.s4 1966171168
          %v556 = vunpack.c.0.s8 %v555
          %v557 = vlaneseq
          %v558 = vshrl.u32 %v557, 7
          %v559 = vsub.s32 %v556, %v558
          %v560 = vrot.slane %v553, %v559
          %v562 = vsel %vm388, %v560, 0.0
          %v564 = vlaneseq
          %v565 = vshrl.u32 %v564, 7
          %v566 = vsub.s32 0, %v565
          %v567 = vrot.slane %v562, %v566
          %v568 = vlaneseq
          %v569 = vshrl.u32 %v568, 7
          %v570 = vsub.s32 1, %v569
          %v571 = vrot.slane %v562, %v570
          %v574 = vadd.f32 %v519, %v567
          %v575 = vadd.f32 %v520, %v571
          %s576 = sld [smem:[#allocation9 + $0x4]]
          %s577 = sld [smem:[#allocation9 + $0xd]]
          %v578 = vstv %s576
          %v579 = vmul.f32 %v578, %v377
          %v580 = vstv %s577
          %v581 = vmul.f32 %v580, %v379
          %v582 = vadd.f32 %v579, %v581
          %v584 = vlaneseq
          %v585 = vshrl.u32 %v584, 7
          %v586 = vsub.s32 0, %v585
          %v587 = vrot.slane %v582, %v586
          %v588 = vlaneseq
          %v589 = vshrl.u32 %v588, 7
          %v590 = vsub.s32 1, %v589
          %v591 = vrot.slane %v582, %v590
          %v594 = vadd.f32 %v574, %v587
          %v595 = vadd.f32 %v575, %v591
          %s596 = sld [smem:[#allocation9 + $0x5]]
          %s597 = sld [smem:[#allocation9 + $0xe]]
          %598 = vrot.lane.b32.xlu0 %v398, 127
          %v599 = vpop.permute.xlu0 %598
          %600 = vrot.lane.b32.xlu0 %v402, 127
          %v601 = vpop.permute.xlu0 %600
          %vm602 = vcmp.lt.s32.totalorder %v382, 127
          %v603 = vsel %vm602, %v599, %v601
          %v604 = vsel %vm602, %v601, %v599
          %v605 = vstv %s596
          %v606 = vmul.f32 %v605, %v603
          %v607 = vmul.f32 %v605, %v604
          %608 = vrot.lane.b32.xlu0 %v419, 127
          %v609 = vpop.permute.xlu0 %608
          %610 = vrot.lane.b32.xlu0 %v423, 127
          %v611 = vpop.permute.xlu0 %610
          %v612 = vsel %vm602, %v609, %v611
          %v613 = vsel %vm602, %v611, %v609
          %v614 = vstv %s597
          %v615 = vmul.f32 %v614, %v612
          %v616 = vmul.f32 %v614, %v613
          %v617 = vadd.f32 %v606, %v615
          %v618 = vadd.f32 %v607, %v616
          %v621 = vcombine.low %v617, %v618
          %v623 = vunpack.c.l.s4 1966171168
          %v624 = vunpack.c.0.s8 %v623
          %v625 = vlaneseq
          %v626 = vshrl.u32 %v625, 7
          %v627 = vsub.s32 %v624, %v626
          %v628 = vrot.slane %v621, %v627
          %v630 = vunpack.c.l.s4 1966171168
          %v631 = vunpack.c.0.s8 %v630
          %v632 = vlaneseq
          %v633 = vshrl.u32 %v632, 7
          %v634 = vsub.s32 %v631, %v633
          %v635 = vrot.slane %v628, %v634
          %v637 = vsel %vm389, %v635, 0.0
          %v639 = vlaneseq
          %v640 = vshrl.u32 %v639, 7
          %v641 = vsub.s32 0, %v640
          %v642 = vrot.slane %v637, %v641
          %v643 = vlaneseq
          %v644 = vshrl.u32 %v643, 7
          %v645 = vsub.s32 1, %v644
          %v646 = vrot.slane %v637, %v645
          %v649 = vadd.f32 %v594, %v642
          %v650 = vadd.f32 %v595, %v646
          %s651 = sld [smem:[#allocation9 + $0x6]]
          %s652 = sld [smem:[#allocation9 + $0xf]]
          %653 = vrot.lane.b32.xlu0 %v398, 113
          %v654 = vpop.permute.xlu0 %653
          %655 = vrot.lane.b32.xlu0 %v402, 113
          %v656 = vpop.permute.xlu0 %655
          %vm657 = vcmp.lt.s32.totalorder %v382, 113
          %v658 = vsel %vm657, %v654, %v656
          %v659 = vsel %vm657, %v656, %v654
          %v660 = vstv %s651
          %v661 = vmul.f32 %v660, %v658
          %v662 = vmul.f32 %v660, %v659
          %663 = vrot.lane.b32.xlu0 %v419, 113
          %v664 = vpop.permute.xlu0 %663
          %665 = vrot.lane.b32.xlu0 %v423, 113
          %v666 = vpop.permute.xlu0 %665
          %v667 = vsel %vm657, %v664, %v666
          %v668 = vsel %vm657, %v666, %v664
          %v669 = vstv %s652
          %v670 = vmul.f32 %v669, %v667
          %v671 = vmul.f32 %v669, %v668
          %v672 = vadd.f32 %v661, %v670
          %v673 = vadd.f32 %v662, %v671
          %vm674 = vmand %vm386, %vm446
          %vm675 = vmand %vm387, %vm447
          %v676 = vsel %vm674, %v672, 0.0
          %v677 = vsel %vm675, %v673, 0.0
          %v678 = vadd.f32 %v649, %v676
          %v679 = vadd.f32 %v650, %v677
          %s680 = sld [smem:[#allocation9 + $0x7]]
          %s681 = sld [smem:[#allocation9 + $0x10]]
          %682 = vrot.lane.b32.xlu0 %v398, 112
          %v683 = vpop.permute.xlu0 %682
          %684 = vrot.lane.b32.xlu0 %v402, 112
          %v685 = vpop.permute.xlu0 %684
          %vm686 = vcmp.lt.s32.totalorder %v382, 112
          %v687 = vsel %vm686, %v683, %v685
          %v688 = vsel %vm686, %v685, %v683
          %v689 = vstv %s680
          %v690 = vmul.f32 %v689, %v687
          %v691 = vmul.f32 %v689, %v688
          %692 = vrot.lane.b32.xlu0 %v419, 112
          %v693 = vpop.permute.xlu0 %692
          %694 = vrot.lane.b32.xlu0 %v423, 112
          %v695 = vpop.permute.xlu0 %694
          %v696 = vsel %vm686, %v693, %v695
          %v697 = vsel %vm686, %v695, %v693
          %v698 = vstv %s681
          %v699 = vmul.f32 %v698, %v696
          %v700 = vmul.f32 %v698, %v697
          %v701 = vadd.f32 %v690, %v699
          %v702 = vadd.f32 %v691, %v700
          %v703 = vsel %vm386, %v701, 0.0
          %v704 = vsel %vm387, %v702, 0.0
          %v705 = vadd.f32 %v678, %v703
          %v706 = vadd.f32 %v679, %v704
          %s707 = sld [smem:[#allocation9 + $0x8]]
          %s708 = sld [smem:[#allocation9 + $0x11]]
          %709 = vrot.lane.b32.xlu0 %v398, 111
          %v710 = vpop.permute.xlu0 %709
          %711 = vrot.lane.b32.xlu0 %v402, 111
          %v712 = vpop.permute.xlu0 %711
          %vm713 = vcmp.lt.s32.totalorder %v382, 111
          %v714 = vsel %vm713, %v710, %v712
          %v715 = vsel %vm713, %v712, %v710
          %v716 = vstv %s707
          %v717 = vmul.f32 %v716, %v714
          %v718 = vmul.f32 %v716, %v715
          %719 = vrot.lane.b32.xlu0 %v419, 111
          %v720 = vpop.permute.xlu0 %719
          %721 = vrot.lane.b32.xlu0 %v423, 111
          %v722 = vpop.permute.xlu0 %721
          %v723 = vsel %vm713, %v720, %v722
          %v724 = vsel %vm713, %v722, %v720
          %v725 = vstv %s708
          %v726 = vmul.f32 %v725, %v723
          %v727 = vmul.f32 %v725, %v724
          %v728 = vadd.f32 %v717, %v726
          %v729 = vadd.f32 %v718, %v727
          %vm730 = vmand %vm386, %vm513
          %vm731 = vmand %vm387, %vm514
          %v732 = vsel %vm730, %v728, 0.0
          %v733 = vsel %vm731, %v729, 0.0
          %v734 = vadd.f32 %v705, %v732
          %v735 = vadd.f32 %v706, %v733
          %v736 = vxor.u32 %v734, 2147483648
          %v737 = vxor.u32 %v735, 2147483648
          %v738 = vmul.f32 %v736, 1.442695
          %v739 = vpow.pop %v738
          %v740 = vmul.f32 %v737, 1.442695
          %v741 = vpow.pop %v740
          %v742 = vadd.f32 %v739, 1.0
          %v743 = vadd.f32 %v741, 1.0
          %v744 = vrcp.pop %v742
          %v745 = vmul.f32 1.0, %v744
          %v746 = vrcp.pop %v743
          %v747 = vmul.f32 1.0, %v746
          %v750 = vcombine.low %v745, %v747
          %v752 = vunpack.c.l.s4 1966171168
          %v753 = vunpack.c.0.s8 %v752
          %v754 = vlaneseq
          %v755 = vshrl.u32 %v754, 7
          %v756 = vsub.s32 %v753, %v755
          %v757 = vrot.slane %v750, %v756
          %v759 = vunpack.c.l.s4 1966171168
          %v760 = vunpack.c.0.s8 %v759
          %v761 = vlaneseq
          %v762 = vshrl.u32 %v761, 7
          %v763 = vsub.s32 %v760, %v762
          %v764 = vrot.slane %v757, %v763
          %v766 = vlaneseq
          %vm767 = vcmp.ge.s32.totalorder %v766, 0
          %vm768 = vcmp.lt.s32.totalorder %v766, 256
          %vm769 = vmand %vm767, %vm768
          %770 = vst.msk [vmem:[%s244] sm:$0x3] %vm769, %v764
        $region56: #{tpu_custom_call.1} parent=35 // pred_fallthru
          _
        %s771 = sand.u32 %s134, 1
        %s772 = scalar_lea.sflag [#allocation7], %s771
        %s773 = sand.u32 %s134, 1
        %s774 = smul.addr %s773, 2
        %s775 = scalar_lea.vmem [#allocation10], %s774
        // Predicated region
        $region57: #{tpu_custom_call.1} parent=35 // pred_check
          %p776 = pneg %p144
        $region58: #{tpu_custom_call.1} parent=35 // pred_check_branch
          %778 = sbr.rel (%p776) target = $region60
        $region59: #{tpu_custom_call.1} parent=35 // pred_region
          %s780 = ssub.s32 32, 32
          %781 = vsyncadd %s772, %s780
          %s782 = smul.addr %s27, 2
          %s783 = smul.addr %s782, 16
          %s784 = scalar_lea.hbm %s4, %s783
          %s786 = sshll.u32 %s775, 4
          %s787 = int_to_ptr.vmem [resolvable:$true] %s786
          %789 = dma.vmem_to_hbm [thread:$0]  %s787, 32, %s784, %s772
        $region60: #{tpu_custom_call.1} parent=35 // pred_fallthru
          _
      $region36: #{tpu_custom_call.1} parent=5 // pred_fallthru
        _
      %p790 = scmp.le.s32.totalorder 2, %s18
      // Predicated region
      $region61: #{tpu_custom_call.1} parent=5 // pred_check
        %p791 = pneg %p790
      $region62: #{tpu_custom_call.1} parent=5 // pred_check_branch
        %793 = sbr.rel (%p791) target = $region64
      $region63: #{tpu_custom_call.1} parent=5 // pred_region
        %s794 = ssub.s32 %s18, 2
        // Predicated region
        $region65: #{tpu_custom_call.1} parent=63 // pred_check
          %p795 = pneg %p150
        $region66: #{tpu_custom_call.1} parent=63 // pred_check_branch
          %797 = sbr.rel (%p795) target = $region68
        $region67: #{tpu_custom_call.1} parent=63 // pred_region
          %s798 = sand.u32 %s135, 1
          %s799 = scalar_lea.sflag [#allocation7], %s798
          %s800 = sand.u32 %s135, 1
          %s801 = smul.addr %s800, 2
          %s802 = scalar_lea.vmem [#allocation10], %s801
          %803 = dma.done %s799, 32
        $region68: #{tpu_custom_call.1} parent=63 // pred_fallthru
          _
      $region64: #{tpu_custom_call.1} parent=5 // pred_fallthru
        _
    $region6: #{tpu_custom_call.1} parent=1 // loop_footer
      %s22 = sadd.s32 1, %s18
    $region7: #{tpu_custom_call.1} parent=1 // loop_footer_branch
      %17 = sbr.rel target = $region3
    $region8: #{tpu_custom_call.1} parent=1 // loop_exit
      _
    %804 = vsyncpa [#allocation6], 1
    %s805 = scalar_lea.sflag [#allocation6], 1
    %806 = vsyncpa %s805, 1
    %807 = vsyncpa [#allocation7], 1
    %s808 = scalar_lea.sflag [#allocation7], 1
    %809 = vsyncpa %s808, 1
    %810 = vsyncpa [#allocation8], 1
    %s811 = scalar_lea.sflag [#allocation8], 1
    %812 = vsyncpa %s811, 1

</llo_original>
